<compile_context>
chip_gen: v6e
topology: v6e:2x2x1
jax: 0.10.0
libtpu: 0.0.40
codegen_flags: <defaults>
</compile_context>

<pallas_src>
import jax
import jax.numpy as jnp
from jax.experimental import pallas as pl
from jax.experimental.pallas import tpu as pltpu


def _round_up(x, m):
    return ((x + m - 1) // m) * m


# ----------------------------------------------------------------------------
# Kernel
# ----------------------------------------------------------------------------
def _mlp_kernel(inv_t_ref, x_ref, w1_ref, b1_ref, w2_ref, b2_ref, o_ref):
    # Cast x to bf16 in-kernel (rides free VPU slots); MXU matmul, f32 accum.
    x = x_ref[...].astype(jnp.bfloat16)
    h = jnp.dot(x, w1_ref[...], preferred_element_type=jnp.float32)
    h = jnp.maximum(h + b1_ref[...], 0.0)

    logits = jnp.dot(h.astype(jnp.bfloat16), w2_ref[...],
                     preferred_element_type=jnp.float32)

    # b2 carries -1e30 in zero-padded output lanes, so after the temperature
    # scale (T > 0) those lanes vanish in the softmax -- no explicit mask needed.
    z = (logits + b2_ref[...]) * inv_t_ref[0, 0]

    # Numerically stable log_softmax over the last axis.
    z_max = jnp.max(z, axis=-1, keepdims=True)
    shifted = z - z_max
    lse = jnp.log(jnp.sum(jnp.exp(shifted), axis=-1, keepdims=True))
    o_ref[...] = (shifted - lse).astype(o_ref.dtype)


# ----------------------------------------------------------------------------
# Parameter prep (one-time): bf16 weights, 128-lane padding, mask baked in bias
# ----------------------------------------------------------------------------
def prepare_params(w1, b1, w2, b2):
    in_dim, hid_dim = w1.shape
    out_dim = w2.shape[1]
    hp = _round_up(hid_dim, 128)
    op = _round_up(out_dim, 128)

    w1p = jnp.zeros((in_dim, hp), jnp.bfloat16).at[:, :hid_dim].set(
        w1.astype(jnp.bfloat16))
    b1p = jnp.zeros((1, hp), jnp.float32).at[:, :hid_dim].set(
        b1.reshape(1, -1).astype(jnp.float32))
    w2p = jnp.zeros((hp, op), jnp.bfloat16).at[:hid_dim, :out_dim].set(
        w2.astype(jnp.bfloat16))
    # Padded output lanes get -1e30 so they drop out of the softmax (T > 0).
    b2p = jnp.full((1, op), -1e30, jnp.float32).at[:, :out_dim].set(
        b2.reshape(1, -1).astype(jnp.float32))
    return (w1p, b1p, w2p, b2p, out_dim)


# ----------------------------------------------------------------------------
# Tiling / VMEM budgeting
# ----------------------------------------------------------------------------
def _vmem_budget_bytes():
    try:
        info = pltpu.get_tpu_info()
        phys = int(getattr(info, "vmem_capacity_bytes", 64 * 1024 * 1024))
    except Exception:
        phys = 64 * 1024 * 1024  # conservative (v7x-sized) default
    return max(16 * 1024 * 1024, min(phys * 3 // 4, 100 * 1024 * 1024))


def _pick_tile_n(N, in_dim, hp, op, budget):
    # Conservative: account for double-buffered weights even though we request
    # single buffering (keeps the fallback path safe too).
    weight_bytes = 2 * (in_dim * hp * 2 + hp * op * 2 + hp * 4 + op * 4)
    n_cap = max(8, _round_up(N, 8))
    tn = 8
    for cand in (2048, 1024, 512, 256, 128, 64, 32, 16, 8):
        if cand > n_cap:
            continue
        per_tile = cand * (2 * in_dim * 4      # double-buffered x tile (f32)
                           + 2 * op * 4        # double-buffered out tile (f32)
                           + hp * 4            # f32 hidden temporary
                           + 2 * op * 4)       # f32 logits / softmax temporaries
        if weight_bytes + per_tile <= budget:
            tn = cand
            break
    return tn


# ----------------------------------------------------------------------------
# pallas_call wrapper
# ----------------------------------------------------------------------------
def _run_pallas(inv_t, x, w1p, b1p, w2p, b2p, tile_n, num_tiles,
                single_buffer_weights, vmem_limit):
    N, in_dim = x.shape
    hp = w1p.shape[1]
    op = w2p.shape[1]

    def wspec(shape):
        if single_buffer_weights:
            return pl.BlockSpec(shape, lambda i: (0, 0),
                                pipeline_mode=pl.Buffered(1))
        return pl.BlockSpec(shape, lambda i: (0, 0))

    cost = pl.CostEstimate(
        flops=int(2 * N * in_dim * hp + 2 * N * hp * op),
        transcendentals=int(N * op + N),
        bytes_accessed=int(N * in_dim * 4 + w1p.size * 2 + w2p.size * 2
                           + b1p.size * 4 + b2p.size * 4 + N * op * 4),
    )

    return pl.pallas_call(
        _mlp_kernel,
        out_shape=jax.ShapeDtypeStruct((N, op), jnp.float32),
        grid_spec=pltpu.PrefetchScalarGridSpec(
            num_scalar_prefetch=0,
            grid=(num_tiles,),
            in_specs=[
                # 1/T scalar in SMEM (no recompile per temperature).
                pl.BlockSpec(memory_space=pltpu.MemorySpace.SMEM),
                # x tiles stream (double-buffered); weights stay resident.
                pl.BlockSpec((tile_n, in_dim), lambda i: (i, 0)),
                wspec((in_dim, hp)),
                wspec((1, hp)),
                wspec((hp, op)),
                wspec((1, op)),
            ],
            out_specs=pl.BlockSpec((tile_n, op), lambda i: (i, 0)),
        ),
        compiler_params=pltpu.CompilerParams(
            dimension_semantics=("parallel",),
            vmem_limit_bytes=int(vmem_limit),
        ),
        cost_estimate=cost,
    )(inv_t, x, w1p, b1p, w2p, b2p)


def mlp_forward(x, params, T=1.0):
    """Pallas MLP forward. x: [N, in_dim] -> [N, out_dim] log-probs (f32). T > 0."""
    if T <= 0:
        raise ValueError("T must be > 0 (padded-lane masking assumes T > 0).")

    w1p, b1p, w2p, b2p, out_dim = params
    N, in_dim = x.shape
    hp = w1p.shape[1]
    op = w2p.shape[1]

    budget = _vmem_budget_bytes()
    tile_n = _pick_tile_n(N, in_dim, hp, op, budget)
    num_tiles = pl.cdiv(N, tile_n)
    # Keep the "parallel" batch axis >= 2 tiles when possible so both
    # TensorCores on v7x get work (harmless ~0.35us extra step on 1-TC chips).
    if num_tiles == 1 and N > 8:
        tile_n = max(8, _round_up(-(-N // 2), 8))
        num_tiles = pl.cdiv(N, tile_n)

    inv_t = jnp.full((1, 1), 1.0 / float(T), jnp.float32)
    x = x.astype(jnp.float32) if x.dtype not in (jnp.float32, jnp.bfloat16) else x

    try:
        out = _run_pallas(inv_t, x, w1p, b1p, w2p, b2p, tile_n, num_tiles,
                          single_buffer_weights=True, vmem_limit=budget)
    except Exception:
        # Fallback for configs where Buffered(1) is not accepted.
        out = _run_pallas(inv_t, x, w1p, b1p, w2p, b2p, tile_n, num_tiles,
                          single_buffer_weights=False, vmem_limit=budget)

    return out if op == out_dim else out[:, :out_dim]


# ----------------------------------------------------------------------------
# Init mimicking nn.Linear defaults
# ----------------------------------------------------------------------------
def init_params(key, in_dim, hid_dim, out_dim):
    k1, k2, k3, k4 = jax.random.split(key, 4)
    bound1 = 1.0 / jnp.sqrt(in_dim)
    bound2 = 1.0 / jnp.sqrt(hid_dim)
    w1 = jax.random.uniform(k1, (in_dim, hid_dim), jnp.float32, -bound1, bound1)
    b1 = jax.random.uniform(k2, (1, hid_dim), jnp.float32, -bound1, bound1)
    w2 = jax.random.uniform(k3, (hid_dim, out_dim), jnp.float32, -bound2, bound2)
    b2 = jax.random.uniform(k4, (1, out_dim), jnp.float32, -bound2, bound2)
    return w1, b1, w2, b2


if __name__ == "__main__":
    # Small shapes; N=20 deliberately exercises the ragged last batch tile.
    N, in_dim, hid_dim, out_dim = 20, 32, 64, 16
    T = 2.0

    key = jax.random.PRNGKey(0)
    kx, kp = jax.random.split(key)
    x = jax.random.normal(kx, (N, in_dim), jnp.float32)
    w1, b1, w2, b2 = init_params(kp, in_dim, hid_dim, out_dim)

    params = prepare_params(w1, b1, w2, b2)
    out = mlp_forward(x, params, T=T)
    out = jax.block_until_ready(out)

    # Reference in plain JAX, matching the bf16 rounding the kernel applies.
    xb = x.astype(jnp.bfloat16).astype(jnp.float32)
    w1b = w1.astype(jnp.bfloat16).astype(jnp.float32)
    w2b = w2.astype(jnp.bfloat16).astype(jnp.float32)
    h_ref = jnp.maximum(xb @ w1b + b1, 0.0)
    hb = h_ref.astype(jnp.bfloat16).astype(jnp.float32)
    logits_ref = hb @ w2b + b2
    ref = jax.nn.log_softmax(logits_ref / T, axis=1)

    assert out.shape == (N, out_dim), f"bad shape {out.shape}"
    assert jnp.allclose(out, ref, atol=2e-2, rtol=2e-2), "mismatch vs reference"

    print("KERNEL_OK")
</pallas_src>

<mosaic_0001>
module attributes {stable_mosaic.version = 11 : i64} {
  func.func @_mlp_kernel(%arg0: i32, %arg1: memref<1x1xf32, #tpu.memory_space<smem>>, %arg2: memref<16x32xf32, #tpu.memory_space<vmem>>, %arg3: memref<32x128xbf16, #tpu.memory_space<vmem>>, %arg4: memref<1x128xf32, #tpu.memory_space<vmem>>, %arg5: memref<128x128xbf16, #tpu.memory_space<vmem>>, %arg6: memref<1x128xf32, #tpu.memory_space<vmem>>, %arg7: memref<16x128xf32, #tpu.memory_space<vmem>>) attributes {dimension_semantics = [#tpu.dimension_semantics<parallel>], iteration_bounds = array<i64: 2>, scalar_prefetch = 0 : i64, scratch_operands = 0 : i64, tpu.core_type = #tpu.core_type<tc>, window_params = [{transform_indices = @transform_0, window_bounds = array<i64: 1, 1>}, {transform_indices = @transform_1, window_bounds = array<i64: 16, 32>}, {pipeline_mode = #tpu.pipeline_mode<synchronous>, transform_indices = @transform_2, window_bounds = array<i64: 32, 128>}, {pipeline_mode = #tpu.pipeline_mode<synchronous>, transform_indices = @transform_3, window_bounds = array<i64: 1, 128>}, {pipeline_mode = #tpu.pipeline_mode<synchronous>, transform_indices = @transform_4, window_bounds = array<i64: 128, 128>}, {pipeline_mode = #tpu.pipeline_mode<synchronous>, transform_indices = @transform_5, window_bounds = array<i64: 1, 128>}, {transform_indices = @transform_6, window_bounds = array<i64: 16, 128>}]} {
    %c0 = arith.constant 0 : index
    %c0_0 = arith.constant 0 : index
    %0 = vector.load %arg2[%c0, %c0_0] : memref<16x32xf32, #tpu.memory_space<vmem>>, vector<16x32xf32>
    %1 = arith.truncf %0 : vector<16x32xf32> to vector<16x32xbf16>
    %c0_1 = arith.constant 0 : index
    %c0_2 = arith.constant 0 : index
    %2 = vector.load %arg3[%c0_1, %c0_2] : memref<32x128xbf16, #tpu.memory_space<vmem>>, vector<32x128xbf16>
    %cst = arith.constant dense<0.000000e+00> : vector<16x128xf32>
    %3 = tpu.matmul %1, %2, %cst {dimension_numbers = #tpu.dot_dimension_numbers<[1], [0], [0], [1], [0, 0, 1, 1], [], []>} : vector<16x32xbf16>, vector<32x128xbf16>, vector<16x128xf32> -> vector<16x128xf32>
    %c0_3 = arith.constant 0 : index
    %c0_4 = arith.constant 0 : index
    %4 = vector.load %arg4[%c0_3, %c0_4] : memref<1x128xf32, #tpu.memory_space<vmem>>, vector<1x128xf32>
    %5 = vector.broadcast %4 : vector<1x128xf32> to vector<16x128xf32>
    %6 = arith.addf %3, %5 : vector<16x128xf32>
    %cst_5 = arith.constant 0.000000e+00 : f32
    %7 = vector.broadcast %cst_5 : f32 to vector<16x128xf32>
    %8 = arith.maximumf %6, %7 : vector<16x128xf32>
    %9 = arith.truncf %8 : vector<16x128xf32> to vector<16x128xbf16>
    %c0_6 = arith.constant 0 : index
    %c0_7 = arith.constant 0 : index
    %10 = vector.load %arg5[%c0_6, %c0_7] : memref<128x128xbf16, #tpu.memory_space<vmem>>, vector<128x128xbf16>
    %cst_8 = arith.constant dense<0.000000e+00> : vector<16x128xf32>
    %11 = tpu.matmul %9, %10, %cst_8 {dimension_numbers = #tpu.dot_dimension_numbers<[1], [0], [0], [1], [0, 0, 1, 1], [], []>} : vector<16x128xbf16>, vector<128x128xbf16>, vector<16x128xf32> -> vector<16x128xf32>
    %c0_9 = arith.constant 0 : index
    %c0_10 = arith.constant 0 : index
    %12 = vector.load %arg6[%c0_9, %c0_10] : memref<1x128xf32, #tpu.memory_space<vmem>>, vector<1x128xf32>
    %13 = vector.broadcast %12 : vector<1x128xf32> to vector<16x128xf32>
    %14 = arith.addf %11, %13 : vector<16x128xf32>
    %c0_11 = arith.constant 0 : index
    %c0_12 = arith.constant 0 : index
    %15 = memref.load %arg1[%c0_11, %c0_12] : memref<1x1xf32, #tpu.memory_space<smem>>
    %16 = vector.broadcast %15 : f32 to vector<16x128xf32>
    %17 = arith.mulf %14, %16 : vector<16x128xf32>
    %cst_13 = arith.constant dense<0xFF800000> : vector<16xf32>
    %18 = vector.multi_reduction <maximumf>, %17, %cst_13 [1] : vector<16x128xf32> to vector<16xf32>
    %19 = vector.shape_cast %18 : vector<16xf32> to vector<16x1xf32>
    %20 = vector.broadcast %19 : vector<16x1xf32> to vector<16x128xf32>
    %21 = arith.subf %17, %20 : vector<16x128xf32>
    %22 = math.exp %21 : vector<16x128xf32>
    %cst_14 = arith.constant dense<0.000000e+00> : vector<16xf32>
    %23 = vector.multi_reduction <add>, %22, %cst_14 [1] : vector<16x128xf32> to vector<16xf32>
    %24 = vector.shape_cast %23 : vector<16xf32> to vector<16x1xf32>
    %25 = math.log %24 : vector<16x1xf32>
    %26 = vector.broadcast %25 : vector<16x1xf32> to vector<16x128xf32>
    %27 = arith.subf %21, %26 : vector<16x128xf32>
    %c0_15 = arith.constant 0 : index
    %c0_16 = arith.constant 0 : index
    %28 = vector.load %arg7[%c0_15, %c0_16] : memref<16x128xf32, #tpu.memory_space<vmem>>, vector<16x128xf32>
    tpu.vector_store %arg7[%c0_15, %c0_16], %27 {strides = array<i32>} : memref<16x128xf32, #tpu.memory_space<vmem>>, vector<16x128xf32>,
    return
  }
  func.func @transform_0(%arg0: i32) -> (i32, i32) {
    %c0_i32 = arith.constant 0 : i32
    %c0_i32_0 = arith.constant 0 : i32
    %c0_i32_1 = arith.constant 0 : i32
    return %c0_i32, %c0_i32_0 : i32, i32
  }
  func.func @transform_1(%arg0: i32) -> (i32, i32) {
    %c0_i32 = arith.constant 0 : i32
    %c0_i32_0 = arith.constant 0 : i32
    return %arg0, %c0_i32 : i32, i32
  }
  func.func @transform_2(%arg0: i32) -> (i32, i32) {
    %c0_i32 = arith.constant 0 : i32
    %c0_i32_0 = arith.constant 0 : i32
    %c0_i32_1 = arith.constant 0 : i32
    return %c0_i32, %c0_i32_0 : i32, i32
  }
  func.func @transform_3(%arg0: i32) -> (i32, i32) {
    %c0_i32 = arith.constant 0 : i32
    %c0_i32_0 = arith.constant 0 : i32
    %c0_i32_1 = arith.constant 0 : i32
    return %c0_i32, %c0_i32_0 : i32, i32
  }
  func.func @transform_4(%arg0: i32) -> (i32, i32) {
    %c0_i32 = arith.constant 0 : i32
    %c0_i32_0 = arith.constant 0 : i32
    %c0_i32_1 = arith.constant 0 : i32
    return %c0_i32, %c0_i32_0 : i32, i32
  }
  func.func @transform_5(%arg0: i32) -> (i32, i32) {
    %c0_i32 = arith.constant 0 : i32
    %c0_i32_0 = arith.constant 0 : i32
    %c0_i32_1 = arith.constant 0 : i32
    return %c0_i32, %c0_i32_0 : i32, i32
  }
  func.func @transform_6(%arg0: i32) -> (i32, i32) {
    %c0_i32 = arith.constant 0 : i32
    %c0_i32_0 = arith.constant 0 : i32
    return %arg0, %c0_i32 : i32, i32
  }
}

module attributes {stable_mosaic.version = 11 : i64} {
  func.func @_mlp_kernel(%arg0: i32, %arg1: memref<1x1xf32, #tpu.memory_space<smem>>, %arg2: memref<16x32xf32, #tpu.memory_space<vmem>>, %arg3: memref<32x128xbf16, #tpu.memory_space<vmem>>, %arg4: memref<1x128xf32, #tpu.memory_space<vmem>>, %arg5: memref<128x128xbf16, #tpu.memory_space<vmem>>, %arg6: memref<1x128xf32, #tpu.memory_space<vmem>>, %arg7: memref<16x128xf32, #tpu.memory_space<vmem>>) attributes {dimension_semantics = [#tpu.dimension_semantics<parallel>], iteration_bounds = array<i64: 2>, scalar_prefetch = 0 : i64, scratch_operands = 0 : i64, tpu.core_type = #tpu.core_type<tc>, window_params = [{transform_indices = @transform_0, window_bounds = array<i64: 1, 1>}, {transform_indices = @transform_1, window_bounds = array<i64: 16, 32>}, {pipeline_mode = #tpu.pipeline_mode<synchronous>, transform_indices = @transform_2, window_bounds = array<i64: 32, 128>}, {pipeline_mode = #tpu.pipeline_mode<synchronous>, transform_indices = @transform_3, window_bounds = array<i64: 1, 128>}, {pipeline_mode = #tpu.pipeline_mode<synchronous>, transform_indices = @transform_4, window_bounds = array<i64: 128, 128>}, {pipeline_mode = #tpu.pipeline_mode<synchronous>, transform_indices = @transform_5, window_bounds = array<i64: 1, 128>}, {transform_indices = @transform_6, window_bounds = array<i64: 16, 128>}]} {
    %c0 = arith.constant 0 : index
    %c0_0 = arith.constant 0 : index
    %0 = vector.load %arg2[%c0, %c0_0] : memref<16x32xf32, #tpu.memory_space<vmem>>, vector<16x32xf32>
    %1 = arith.truncf %0 : vector<16x32xf32> to vector<16x32xbf16>
    %c0_1 = arith.constant 0 : index
    %c0_2 = arith.constant 0 : index
    %2 = vector.load %arg3[%c0_1, %c0_2] : memref<32x128xbf16, #tpu.memory_space<vmem>>, vector<32x128xbf16>
    %cst = arith.constant dense<0.000000e+00> : vector<16x128xf32>
    %3 = tpu.matmul %1, %2, %cst {dimension_numbers = #tpu.dot_dimension_numbers<[1], [0], [0], [1], [0, 0, 1, 1], [], []>} : vector<16x32xbf16>, vector<32x128xbf16>, vector<16x128xf32> -> vector<16x128xf32>
    %c0_3 = arith.constant 0 : index
    %c0_4 = arith.constant 0 : index
    %4 = vector.load %arg4[%c0_3, %c0_4] : memref<1x128xf32, #tpu.memory_space<vmem>>, vector<1x128xf32>
    %5 = vector.broadcast %4 : vector<1x128xf32> to vector<16x128xf32>
    %6 = arith.addf %3, %5 : vector<16x128xf32>
    %cst_5 = arith.constant 0.000000e+00 : f32
    %7 = vector.broadcast %cst_5 : f32 to vector<16x128xf32>
    %8 = arith.maximumf %6, %7 : vector<16x128xf32>
    %9 = arith.truncf %8 : vector<16x128xf32> to vector<16x128xbf16>
    %c0_6 = arith.constant 0 : index
    %c0_7 = arith.constant 0 : index
    %10 = vector.load %arg5[%c0_6, %c0_7] : memref<128x128xbf16, #tpu.memory_space<vmem>>, vector<128x128xbf16>
    %cst_8 = arith.constant dense<0.000000e+00> : vector<16x128xf32>
    %11 = tpu.matmul %9, %10, %cst_8 {dimension_numbers = #tpu.dot_dimension_numbers<[1], [0], [0], [1], [0, 0, 1, 1], [], []>} : vector<16x128xbf16>, vector<128x128xbf16>, vector<16x128xf32> -> vector<16x128xf32>
    %c0_9 = arith.constant 0 : index
    %c0_10 = arith.constant 0 : index
    %12 = vector.load %arg6[%c0_9, %c0_10] : memref<1x128xf32, #tpu.memory_space<vmem>>, vector<1x128xf32>
    %13 = vector.broadcast %12 : vector<1x128xf32> to vector<16x128xf32>
    %14 = arith.addf %11, %13 : vector<16x128xf32>
    %c0_11 = arith.constant 0 : index
    %c0_12 = arith.constant 0 : index
    %15 = memref.load %arg1[%c0_11, %c0_12] : memref<1x1xf32, #tpu.memory_space<smem>>
    %16 = vector.broadcast %15 : f32 to vector<16x128xf32>
    %17 = arith.mulf %14, %16 : vector<16x128xf32>
    %cst_13 = arith.constant dense<0xFF800000> : vector<16xf32>
    %18 = vector.multi_reduction <maximumf>, %17, %cst_13 [1] : vector<16x128xf32> to vector<16xf32>
    %19 = vector.shape_cast %18 : vector<16xf32> to vector<16x1xf32>
    %20 = vector.broadcast %19 : vector<16x1xf32> to vector<16x128xf32>
    %21 = arith.subf %17, %20 : vector<16x128xf32>
    %22 = math.exp %21 : vector<16x128xf32>
    %cst_14 = arith.constant dense<0.000000e+00> : vector<16xf32>
    %23 = vector.multi_reduction <add>, %22, %cst_14 [1] : vector<16x128xf32> to vector<16xf32>
    %24 = vector.shape_cast %23 : vector<16xf32> to vector<16x1xf32>
    %25 = math.log %24 : vector<16x1xf32>
    %26 = vector.broadcast %25 : vector<16x1xf32> to vector<16x128xf32>
    %27 = arith.subf %21, %26 : vector<16x128xf32>
    %c0_15 = arith.constant 0 : index
    %c0_16 = arith.constant 0 : index
    %28 = vector.load %arg7[%c0_15, %c0_16] : memref<16x128xf32, #tpu.memory_space<vmem>>, vector<16x128xf32>
    tpu.vector_store %arg7[%c0_15, %c0_16], %27 {strides = array<i32>} : memref<16x128xf32, #tpu.memory_space<vmem>>, vector<16x128xf32>,
    return
  }
  func.func @transform_0(%arg0: i32) -> (i32, i32) {
    %c0_i32 = arith.constant 0 : i32
    %c0_i32_0 = arith.constant 0 : i32
    %c0_i32_1 = arith.constant 0 : i32
    return %c0_i32, %c0_i32_0 : i32, i32
  }
  func.func @transform_1(%arg0: i32) -> (i32, i32) {
    %c0_i32 = arith.constant 0 : i32
    %c0_i32_0 = arith.constant 0 : i32
    return %arg0, %c0_i32 : i32, i32
  }
  func.func @transform_2(%arg0: i32) -> (i32, i32) {
    %c0_i32 = arith.constant 0 : i32
    %c0_i32_0 = arith.constant 0 : i32
    %c0_i32_1 = arith.constant 0 : i32
    return %c0_i32, %c0_i32_0 : i32, i32
  }
  func.func @transform_3(%arg0: i32) -> (i32, i32) {
    %c0_i32 = arith.constant 0 : i32
    %c0_i32_0 = arith.constant 0 : i32
    %c0_i32_1 = arith.constant 0 : i32
    return %c0_i32, %c0_i32_0 : i32, i32
  }
  func.func @transform_4(%arg0: i32) -> (i32, i32) {
    %c0_i32 = arith.constant 0 : i32
    %c0_i32_0 = arith.constant 0 : i32
    %c0_i32_1 = arith.constant 0 : i32
    return %c0_i32, %c0_i32_0 : i32, i32
  }
  func.func @transform_5(%arg0: i32) -> (i32, i32) {
    %c0_i32 = arith.constant 0 : i32
    %c0_i32_0 = arith.constant 0 : i32
    %c0_i32_1 = arith.constant 0 : i32
    return %c0_i32, %c0_i32_0 : i32, i32
  }
  func.func @transform_6(%arg0: i32) -> (i32, i32) {
    %c0_i32 = arith.constant 0 : i32
    %c0_i32_0 = arith.constant 0 : i32
    return %arg0, %c0_i32 : i32, i32
  }
}

</mosaic_0001>

<llo_original>
// kernel: tpu_custom_call.1
$region0: #{tpu_custom_call.1}
  #allocation0 [shape = 'u32[]', space=smem, size = 0x4, offset = 0x4, fixed_abs, tag = 'smem constant byte address 0x4 - core index']
  #allocation1 [shape = 'u32[144,128]{1,0:T(1,128)}', space=vmem, size = 0x12000, scoped, tag = 'internal scratch']
  #allocation2 [shape = 'f32[1,1]{1,0:T(1,128)S(6)}', space=smem, size = 0x200, scoped, tag = 'scoped memory for tpu_custom_call.1']
  %s0 = inlined_call_operand.<no memory space> [shape: f32[1,1], index: 0, kind: input, shape index: {}]
  %s1 = inlined_call_operand.hbm [shape: f32[20,32], index: 1, kind: input, shape index: {}]
  %s2 = inlined_call_operand.hbm [shape: bf16[32,128], index: 2, kind: input, shape index: {}]
  %s3 = inlined_call_operand.vmem [shape: f32[1,128], index: 3, kind: input, shape index: {}]
  %s4 = inlined_call_operand.hbm [shape: bf16[128,128], index: 4, kind: input, shape index: {}]
  %s5 = inlined_call_operand.vmem [shape: f32[1,128], index: 5, kind: input, shape index: {}]
  %s6 = inlined_call_operand.hbm [shape: f32[20,128], index: 6, kind: output, shape index: {}]
  %s7 = sld [smem:[#allocation0]]
  $region69: #{tpu_custom_call.1} parent=0
    _
  %s9 = ssub.s32 1, %s7
  %s10 = scalar_select 0, %s9, %s7
  %11 = sst [smem:[#allocation2]] %s0
  $region1: #{tpu_custom_call.1} parent=0
    #allocation3 [shape = 'u8[16384]{0}', space=vmem, size = 0x4000, scoped, tag = 'input window, operand 1']
    #allocation4 [shape = 's32[2]{0}', space=sflag, size = 0x8, scoped, tag = 'scoped memory for tpu_custom_call.1']
    #allocation5 [shape = 's32[2]{0}', space=sflag, size = 0x8, scoped, tag = 'scoped memory for tpu_custom_call.1']
    #allocation6 [shape = 'u8[8192]{0}', space=vmem, size = 0x2000, scoped, tag = 'input window, operand 2, single buffered']
    #allocation7 [shape = 's32[1]{0}', space=sflag, size = 0x4, scoped, tag = 'scoped memory for tpu_custom_call.1']
    #allocation8 [shape = 'u8[32768]{0}', space=vmem, size = 0x8000, scoped, tag = 'input window, operand 4, single buffered']
    #allocation9 [shape = 'u8[16384]{0}', space=vmem, size = 0x4000, scoped, tag = 'output window, operand 0']
    %12 = vsyncpa [#allocation4], 0
    %s13 = scalar_lea.sflag [#allocation4], 1
    %14 = vsyncpa %s13, 0
    %15 = vsyncpa [#allocation7], 0
    %16 = vsyncpa [#allocation5], 0
    %s17 = scalar_lea.sflag [#allocation5], 1
    %18 = vsyncpa %s17, 0
    loop: start=0, step=1, limit=4
    $region2: #{tpu_custom_call.1} parent=1 // loop_pre_header
      _
    $region3: #{tpu_custom_call.1} parent=1 // loop_header
      %s20 = sphi 0, %s24
      %p21 = scmp.ge.s32.totalorder %s20, 4
      %s28 = sphi 0, %s28
      %s30 = sphi 0, %s28
      %s31 = sphi 0, %s30
      %s45 = sphi 0, %s31
      %s51 = sphi 0, %s53
      %s54 = sphi 0, %s51
      %s55 = sphi 0, %s54
      %s71 = sphi 0, %s55
      %s75 = sphi 0, %s75
      %s77 = sphi 0, %s75
      %s78 = sphi 0, %s77
      %s92 = sphi 0, %s78
      %s96 = sphi 0, %s96
      %s98 = sphi 0, %s96
      %s99 = sphi 0, %s98
      %s113 = sphi 0, %s99
      %s117 = sphi 0, %s117
      %s119 = sphi 0, %s117
      %s120 = sphi 0, %s119
      %s134 = sphi 0, %s120
      %s138 = sphi 0, %s138
      %s140 = sphi 0, %s138
      %s141 = sphi 0, %s140
      %s155 = sphi 0, %s141
      %s161 = sphi 0, %s163
      %s164 = sphi 0, %s161
      %s165 = sphi 0, %s164
      %s181 = sphi 0, %s165
    $region4: #{tpu_custom_call.1} parent=1 // loop_header_branch
      %23 = sbr.rel (%p21) target = $region8
    $region5: #{tpu_custom_call.1} parent=1 // loop_body
      %s25 = ssub.s32 %s20, 1
      %s26 = ssub.s32 %s20, 2
      %s27 = sadd.s32 %s20, 1
      %s29 = sadd.s32 %s28, 1
      %p32 = scmp.eq.s32.totalorder %s20, 1
      %p33 = scmp.ne.s32.totalorder %s28, %s30
      %p34 = scmp.eq.s32.totalorder %s20, 0
      %p35 = por %p33, %p34
      %p36 = scmp.ne.s32.totalorder %s28, %s30
      %p37 = scmp.eq.s32.totalorder %s25, 1
      %p38 = por %p36, %p37
      %p39 = scmp.ne.s32.totalorder %s30, %s31
      %p40 = scmp.eq.s32.totalorder %s25, 0
      %p41 = por %p39, %p40
      %p42 = scmp.ne.s32.totalorder %s30, %s31
      %p43 = scmp.eq.s32.totalorder %s26, 1
      %p44 = por %p42, %p43
      %p46 = scmp.ne.s32.totalorder %s31, %s45
      %p47 = scmp.eq.s32.totalorder %s26, 0
      %p48 = por %p46, %p47
      %s49 = ssub.s32 %s20, %s27
      %p50 = scmp.eq.s32.totalorder %s49, 0
      %s52 = sadd.s32 %s51, 1
      %s53 = scalar_select %p50, %s51, %s52
      %p56 = pneg %p50
      %p57 = scmp.eq.s32.totalorder %s20, 1
      %p58 = por %p56, %p57
      %p59 = scmp.ne.s32.totalorder %s51, %s54
      %p60 = scmp.eq.s32.totalorder %s20, 0
      %p61 = por %p59, %p60
      %p62 = scmp.ne.s32.totalorder %s51, %s54
      %p63 = scmp.eq.s32.totalorder %s25, 1
      %p64 = por %p62, %p63
      %p65 = scmp.ne.s32.totalorder %s54, %s55
      %p66 = scmp.eq.s32.totalorder %s25, 0
      %p67 = por %p65, %p66
      %p68 = scmp.ne.s32.totalorder %s54, %s55
      %p69 = scmp.eq.s32.totalorder %s26, 1
      %p70 = por %p68, %p69
      %p72 = scmp.ne.s32.totalorder %s55, %s71
      %p73 = scmp.eq.s32.totalorder %s26, 0
      %p74 = por %p72, %p73
      %s76 = sadd.s32 %s75, 1
      %p79 = scmp.eq.s32.totalorder %s20, 1
      %p80 = scmp.ne.s32.totalorder %s75, %s77
      %p81 = scmp.eq.s32.totalorder %s20, 0
      %p82 = por %p80, %p81
      %p83 = scmp.ne.s32.totalorder %s75, %s77
      %p84 = scmp.eq.s32.totalorder %s25, 1
      %p85 = por %p83, %p84
      %p86 = scmp.ne.s32.totalorder %s77, %s78
      %p87 = scmp.eq.s32.totalorder %s25, 0
      %p88 = por %p86, %p87
      %p89 = scmp.ne.s32.totalorder %s77, %s78
      %p90 = scmp.eq.s32.totalorder %s26, 1
      %p91 = por %p89, %p90
      %p93 = scmp.ne.s32.totalorder %s78, %s92
      %p94 = scmp.eq.s32.totalorder %s26, 0
      %p95 = por %p93, %p94
      %s97 = sadd.s32 %s96, 1
      %p100 = scmp.eq.s32.totalorder %s20, 1
      %p101 = scmp.ne.s32.totalorder %s96, %s98
      %p102 = scmp.eq.s32.totalorder %s20, 0
      %p103 = por %p101, %p102
      %p104 = scmp.ne.s32.totalorder %s96, %s98
      %p105 = scmp.eq.s32.totalorder %s25, 1
      %p106 = por %p104, %p105
      %p107 = scmp.ne.s32.totalorder %s98, %s99
      %p108 = scmp.eq.s32.totalorder %s25, 0
      %p109 = por %p107, %p108
      %p110 = scmp.ne.s32.totalorder %s98, %s99
      %p111 = scmp.eq.s32.totalorder %s26, 1
      %p112 = por %p110, %p111
      %p114 = scmp.ne.s32.totalorder %s99, %s113
      %p115 = scmp.eq.s32.totalorder %s26, 0
      %p116 = por %p114, %p115
      %s118 = sadd.s32 %s117, 1
      %p121 = scmp.eq.s32.totalorder %s20, 1
      %p122 = scmp.ne.s32.totalorder %s117, %s119
      %p123 = scmp.eq.s32.totalorder %s20, 0
      %p124 = por %p122, %p123
      %p125 = scmp.ne.s32.totalorder %s117, %s119
      %p126 = scmp.eq.s32.totalorder %s25, 1
      %p127 = por %p125, %p126
      %p128 = scmp.ne.s32.totalorder %s119, %s120
      %p129 = scmp.eq.s32.totalorder %s25, 0
      %p130 = por %p128, %p129
      %p131 = scmp.ne.s32.totalorder %s119, %s120
      %p132 = scmp.eq.s32.totalorder %s26, 1
      %p133 = por %p131, %p132
      %p135 = scmp.ne.s32.totalorder %s120, %s134
      %p136 = scmp.eq.s32.totalorder %s26, 0
      %p137 = por %p135, %p136
      %s139 = sadd.s32 %s138, 1
      %p142 = scmp.eq.s32.totalorder %s20, 1
      %p143 = scmp.ne.s32.totalorder %s138, %s140
      %p144 = scmp.eq.s32.totalorder %s20, 0
      %p145 = por %p143, %p144
      %p146 = scmp.ne.s32.totalorder %s138, %s140
      %p147 = scmp.eq.s32.totalorder %s25, 1
      %p148 = por %p146, %p147
      %p149 = scmp.ne.s32.totalorder %s140, %s141
      %p150 = scmp.eq.s32.totalorder %s25, 0
      %p151 = por %p149, %p150
      %p152 = scmp.ne.s32.totalorder %s140, %s141
      %p153 = scmp.eq.s32.totalorder %s26, 1
      %p154 = por %p152, %p153
      %p156 = scmp.ne.s32.totalorder %s141, %s155
      %p157 = scmp.eq.s32.totalorder %s26, 0
      %p158 = por %p156, %p157
      %s159 = ssub.s32 %s20, %s27
      %p160 = scmp.eq.s32.totalorder %s159, 0
      %s162 = sadd.s32 %s161, 1
      %s163 = scalar_select %p160, %s161, %s162
      %p166 = pneg %p160
      %p167 = scmp.eq.s32.totalorder %s20, 1
      %p168 = por %p166, %p167
      %p169 = scmp.ne.s32.totalorder %s161, %s164
      %p170 = scmp.eq.s32.totalorder %s20, 0
      %p171 = por %p169, %p170
      %p172 = scmp.ne.s32.totalorder %s161, %s164
      %p173 = scmp.eq.s32.totalorder %s25, 1
      %p174 = por %p172, %p173
      %p175 = scmp.ne.s32.totalorder %s164, %s165
      %p176 = scmp.eq.s32.totalorder %s25, 0
      %p177 = por %p175, %p176
      %p178 = scmp.ne.s32.totalorder %s164, %s165
      %p179 = scmp.eq.s32.totalorder %s26, 1
      %p180 = por %p178, %p179
      %p182 = scmp.ne.s32.totalorder %s165, %s181
      %p183 = scmp.eq.s32.totalorder %s26, 0
      %p184 = por %p182, %p183
      %p185 = scmp.le.s32.totalorder 1, %s20
      %p186 = scmp.lt.s32.totalorder %s20, 3
      %p187 = pnand %p185, %p186
      %p188 = pneg %p187
      // Predicated region
      $region9: #{tpu_custom_call.1} parent=5 // pred_check
        _
      $region10: #{tpu_custom_call.1} parent=5 // pred_check_branch
        %190 = sbr.rel (%p187) target = $region12
      $region11: #{tpu_custom_call.1} parent=5 // pred_region
        %s191 = ssub.s32 %s20, 1
        // Predicated region
        $region13: #{tpu_custom_call.1} parent=11 // pred_check
          %p192 = pneg %p41
        $region14: #{tpu_custom_call.1} parent=11 // pred_check_branch
          %194 = sbr.rel (%p192) target = $region16
        $region15: #{tpu_custom_call.1} parent=11 // pred_region
          _
        $region16: #{tpu_custom_call.1} parent=11 // pred_fallthru
          _
        // Predicated region
        $region17: #{tpu_custom_call.1} parent=11 // pred_check
          %p195 = pneg %p88
        $region18: #{tpu_custom_call.1} parent=11 // pred_check_branch
          %197 = sbr.rel (%p195) target = $region20
        $region19: #{tpu_custom_call.1} parent=11 // pred_region
          %s199 = ssub.s32 256, 256
          %200 = vsyncadd [#allocation7], %s199
          %s201 = sshll.u32 [#allocation6], 4
          %s202 = int_to_ptr.vmem [resolvable:$true] %s201
          %207 = dma.hbm_to_vmem [thread:$0]  %s2, 256, %s202, [#allocation7], 64, 64, 4
        $region20: #{tpu_custom_call.1} parent=11 // pred_fallthru
          _
        // Predicated region
        $region21: #{tpu_custom_call.1} parent=11 // pred_check
          %p208 = pneg %p109
        $region22: #{tpu_custom_call.1} parent=11 // pred_check_branch
          %210 = sbr.rel (%p208) target = $region24
        $region23: #{tpu_custom_call.1} parent=11 // pred_region
          _
        $region24: #{tpu_custom_call.1} parent=11 // pred_fallthru
          _
        // Predicated region
        $region25: #{tpu_custom_call.1} parent=11 // pred_check
          %p211 = pneg %p130
        $region26: #{tpu_custom_call.1} parent=11 // pred_check_branch
          %213 = sbr.rel (%p211) target = $region28
        $region27: #{tpu_custom_call.1} parent=11 // pred_region
          %s215 = ssub.s32 1024, 1024
          %216 = vsyncadd [#allocation7], %s215
          %s217 = sshll.u32 [#allocation8], 4
          %s218 = int_to_ptr.vmem [resolvable:$true] %s217
          %223 = dma.hbm_to_vmem [thread:$0]  %s4, 1024, %s218, [#allocation7], 64, 64, 4
        $region28: #{tpu_custom_call.1} parent=11 // pred_fallthru
          _
        // Predicated region
        $region29: #{tpu_custom_call.1} parent=11 // pred_check
          %p224 = pneg %p151
        $region30: #{tpu_custom_call.1} parent=11 // pred_check_branch
          %226 = sbr.rel (%p224) target = $region32
        $region31: #{tpu_custom_call.1} parent=11 // pred_region
          _
        $region32: #{tpu_custom_call.1} parent=11 // pred_fallthru
          _
      $region12: #{tpu_custom_call.1} parent=5 // pred_fallthru
        _
      %p227 = scmp.lt.s32.totalorder %s20, 2
      // Predicated region
      $region33: #{tpu_custom_call.1} parent=5 // pred_check
        %p228 = pneg %p227
      $region34: #{tpu_custom_call.1} parent=5 // pred_check_branch
        %230 = sbr.rel (%p228) target = $region36
      $region35: #{tpu_custom_call.1} parent=5 // pred_region
        // Predicated region
        $region37: #{tpu_custom_call.1} parent=35 // pred_check
          %p231 = pneg %p61
        $region38: #{tpu_custom_call.1} parent=35 // pred_check_branch
          %233 = sbr.rel (%p231) target = $region40
        $region39: #{tpu_custom_call.1} parent=35 // pred_region
          %s234 = sand.u32 %s51, 1
          %s235 = scalar_lea.sflag [#allocation4], %s234
          %s236 = sand.u32 %s51, 1
          %s237 = smul.addr %s236, 16
          %s238 = scalar_lea.vmem [#allocation3], %s237
          %s239 = smul.u32 2, %s20
          %s240 = ssub.s32 3, %s239
          %p241 = scmp.lt.s32.totalorder %s240, 2
          %s242 = scalar_select %p241, %s240, 2
          %s243 = smul.u32 128, %s242
          %s245 = ssub.s32 256, %s243
          %246 = vsyncadd %s235, %s245
          %p247 = scmp.ne.s32.totalorder 0, %s243
          %s248 = smul.addr %s239, 128
          %s249 = scalar_lea.hbm %s1, %s248
          %s250 = smul.u32 8, %s242
          %s251 = sshll.u32 %s238, 4
          %s252 = int_to_ptr.vmem [resolvable:$true] %s251
          %s253 = sshll.u32 %s250, 4
          %257 = dma.hbm_to_vmem [thread:$0]  (%p247), %s249, %s253, %s252, %s235, 128, 128, 8
        $region40: #{tpu_custom_call.1} parent=35 // pred_fallthru
          _
      $region36: #{tpu_custom_call.1} parent=5 // pred_fallthru
        _
      %p258 = scmp.le.s32.totalorder 1, %s20
      %p259 = scmp.lt.s32.totalorder %s20, 3
      %p260 = pnand %p258, %p259
      %p261 = pneg %p260
      // Predicated region
      $region41: #{tpu_custom_call.1} parent=5 // pred_check
        _
      $region42: #{tpu_custom_call.1} parent=5 // pred_check_branch
        %263 = sbr.rel (%p260) target = $region44
      $region43: #{tpu_custom_call.1} parent=5 // pred_region
        %s264 = ssub.s32 %s20, 1
        %s265 = sand.u32 %s54, 1
        %s266 = scalar_lea.sflag [#allocation4], %s265
        %s267 = sand.u32 %s54, 1
        %s268 = smul.addr %s267, 16
        %s269 = scalar_lea.vmem [#allocation3], %s268
        // Predicated region
        $region45: #{tpu_custom_call.1} parent=43 // pred_check
          %p270 = pneg %p67
        $region46: #{tpu_custom_call.1} parent=43 // pred_check_branch
          %272 = sbr.rel (%p270) target = $region48
        $region47: #{tpu_custom_call.1} parent=43 // pred_region
          %273 = dma.done %s266, 256
        $region48: #{tpu_custom_call.1} parent=43 // pred_fallthru
          _
        // Predicated region
        $region49: #{tpu_custom_call.1} parent=43 // pred_check
          %p274 = pneg %p88
        $region50: #{tpu_custom_call.1} parent=43 // pred_check_branch
          %276 = sbr.rel (%p274) target = $region52
        $region51: #{tpu_custom_call.1} parent=43 // pred_region
          %277 = dma.done [#allocation7], 256
        $region52: #{tpu_custom_call.1} parent=43 // pred_fallthru
          _
        // Predicated region
        $region53: #{tpu_custom_call.1} parent=43 // pred_check
          %p278 = pneg %p130
        $region54: #{tpu_custom_call.1} parent=43 // pred_check_branch
          %280 = sbr.rel (%p278) target = $region56
        $region55: #{tpu_custom_call.1} parent=43 // pred_region
          %281 = dma.done [#allocation7], 1024
        $region56: #{tpu_custom_call.1} parent=43 // pred_fallthru
          _
        %p282 = pneg %p41
        %p283 = pneg %p38
        %s284 = sand.u32 %s54, 1
        %s285 = scalar_lea.sflag [#allocation4], %s284
        %s286 = sand.u32 %s54, 1
        %s287 = smul.addr %s286, 16
        %s288 = scalar_lea.vmem [#allocation3], %s287
        %p289 = pneg %p67
        %p290 = pneg %p64
        %p291 = pneg %p88
        %p292 = pneg %p85
        %p293 = pneg %p109
        %p294 = pneg %p106
        %p295 = pneg %p130
        %p296 = pneg %p127
        %p297 = pneg %p151
        %p298 = pneg %p148
        %p299 = pneg %p177
        %p300 = pneg %p174
        %s301 = sand.u32 %s164, 1
        %s302 = scalar_lea.sflag [#allocation5], %s301
        %s303 = sand.u32 %s164, 1
        %s304 = smul.addr %s303, 16
        %s305 = scalar_lea.vmem [#allocation9], %s304
        %s306 = smul.u32 2, %s25
        %s307 = ssub.s32 3, %s306
        %p308 = scmp.lt.s32.totalorder %s307, 2
        %s309 = scalar_select %p308, %s307, 2
        %s310 = smul.u32 128, %s309
        %s311 = smul.u32 2, %s25
        %s312 = ssub.s32 3, %s311
        %p313 = scmp.lt.s32.totalorder %s312, 2
        %s314 = scalar_select %p313, %s312, 2
        %s315 = smul.u32 128, %s314
        %v317 = vld [vmem:[%s269] sm:$0xff]
        %v318 = vld [vmem:[%s269 + $0x8] sm:$0xff]
        %v319 = vpack.c.bf16 %v318, %v317
        %v320 = vld [vmem:[#allocation6] sm:$0xf]
        %v321 = vld [vmem:[#allocation6 + $0x4] sm:$0xf]
        %v322 = vld [vmem:[#allocation6 + $0x8] sm:$0xf]
        %v323 = vld [vmem:[#allocation6 + $0xc] sm:$0xf]
        %v324 = vld [vmem:[%s3] sm:$0x1]
        %v326 = vlaneseq
        %v327 = vshrl.u32 %v326, 7
        %v328 = vsub.s32 0, %v327
        %v329 = vrot.slane %v324, %v328
        %v335 = vunpack.c.l.b16 %v320
        %v336 = vunpack.c.l.b16 %v321
        %v337 = vunpack.c.l.b16 %v322
        %v338 = vunpack.c.l.b16 %v323
        %v339 = vpack.c.b16 %v336, %v335
        %v340 = vpack.c.b16 %v338, %v337
        %vm343 = vcmask 261120
        %v345 = vsel %vm343, %v319, 0
        %347 = vmatprep.subr.bf16.mxu0 0
        %348 = vmatpush1.bf16.msra.mxu0 0
        %349 = vmatprep.subr.bf16.mxu0 0
        %350 = vmatpush1.bf16.msra.mxu0 0
        %351 = vmatprep.subr.bf16.mxu0 0
        %352 = vmatpush1.bf16.msra.mxu0 0
        %353 = vmatprep.subr.bf16.mxu0 0
        %354 = vmatpush1.bf16.msra.mxu0 0
        %355 = vmatprep.subr.bf16.mxu0 0
        %356 = vmatpush1.bf16.msra.mxu0 0
        %357 = vmatprep.subr.bf16.mxu0 0
        %358 = vmatpush1.bf16.msra.mxu0 0
        %359 = vmatprep.subr.bf16.mxu0 0
        %360 = vmatpush1.bf16.msra.mxu0 %v340
        %361 = vmatprep.subr.bf16.mxu0 0
        %362 = vmatpush1.bf16.msra.mxu0 %v339
        %363 = vmatprep.subr.bf16.mxu0 0
        %364 = vmatpush2.bf16.msra.mxu0 0
        %365 = vmatprep.subr.bf16.mxu0 0
        %366 = vmatpush2.bf16.msra.mxu0 0
        %367 = vmatprep.subr.bf16.mxu0 0
        %368 = vmatpush2.bf16.msra.mxu0 0
        %369 = vmatprep.subr.bf16.mxu0 0
        %370 = vmatpush2.bf16.msra.mxu0 0
        %371 = vmatprep.subr.bf16.mxu0 0
        %372 = vmatpush2.bf16.msra.mxu0 0
        %373 = vmatprep.subr.bf16.mxu0 0
        %374 = vmatpush2.bf16.msra.mxu0 0
        %375 = vmatprep.subr.bf16.mxu0 0
        %376 = vmatpush2.bf16.msra.mxu0 0
        %377 = vmatprep.subr.bf16.mxu0 0
        %378 = vmatpush2.bf16.msra.mxu0 0
        %379 = vmatprep.mubr.bf16.mxu0 0
        %380 = vmatmul.mubr.bf16.gmra.mxu0 %v345
        %v381 = vpop.f32.mrf.mxu0
        %v382 = vadd.f32 %v329, %v381
        %v383 = vpop.f32.mrf.mxu0
        %v384 = vpop.f32.mrf.mxu0
        %v385 = vadd.f32 %v329, %v384
        %v386 = vpop.f32.mrf.mxu0
        %387 = vdwg.mxu0
        %v388 = vmax.f32 %v382, 0.0
        %v389 = vmax.f32 %v385, 0.0
        %v390 = vpack.c.bf16 %v389, %v388
        %v391 = vld [vmem:[#allocation8] sm:$0xf]
        %v392 = vld [vmem:[#allocation8 + $0x4] sm:$0xf]
        %v393 = vld [vmem:[#allocation8 + $0x8] sm:$0xf]
        %v394 = vld [vmem:[#allocation8 + $0xc] sm:$0xf]
        %v395 = vld [vmem:[#allocation8 + $0x10] sm:$0xf]
        %v396 = vld [vmem:[#allocation8 + $0x14] sm:$0xf]
        %v397 = vld [vmem:[#allocation8 + $0x18] sm:$0xf]
        %v398 = vld [vmem:[#allocation8 + $0x1c] sm:$0xf]
        %v399 = vld [vmem:[#allocation8 + $0x20] sm:$0xf]
        %v400 = vld [vmem:[#allocation8 + $0x24] sm:$0xf]
        %v401 = vld [vmem:[#allocation8 + $0x28] sm:$0xf]
        %v402 = vld [vmem:[#allocation8 + $0x2c] sm:$0xf]
        %v403 = vld [vmem:[#allocation8 + $0x30] sm:$0xf]
        %v404 = vld [vmem:[#allocation8 + $0x34] sm:$0xf]
        %v405 = vld [vmem:[#allocation8 + $0x38] sm:$0xf]
        %v406 = vld [vmem:[#allocation8 + $0x3c] sm:$0xf]
        %v407 = vld [vmem:[%s5] sm:$0x1]
        %v409 = vlaneseq
        %v410 = vshrl.u32 %v409, 7
        %v411 = vsub.s32 0, %v410
        %v412 = vrot.slane %v407, %v411
        %v430 = vunpack.c.l.b16 %v391
        %v431 = vunpack.c.l.b16 %v392
        %v432 = vunpack.c.l.b16 %v393
        %v433 = vunpack.c.l.b16 %v394
        %v434 = vunpack.c.l.b16 %v395
        %v435 = vunpack.c.l.b16 %v396
        %v436 = vunpack.c.l.b16 %v397
        %v437 = vunpack.c.l.b16 %v398
        %v438 = vunpack.c.l.b16 %v399
        %v439 = vunpack.c.l.b16 %v400
        %v440 = vunpack.c.l.b16 %v401
        %v441 = vunpack.c.l.b16 %v402
        %v442 = vunpack.c.l.b16 %v403
        %v443 = vunpack.c.l.b16 %v404
        %v444 = vunpack.c.l.b16 %v405
        %v445 = vunpack.c.l.b16 %v406
        %v446 = vpack.c.b16 %v431, %v430
        %v447 = vpack.c.b16 %v433, %v432
        %v448 = vpack.c.b16 %v435, %v434
        %v449 = vpack.c.b16 %v437, %v436
        %v450 = vpack.c.b16 %v439, %v438
        %v451 = vpack.c.b16 %v441, %v440
        %v452 = vpack.c.b16 %v443, %v442
        %v453 = vpack.c.b16 %v445, %v444
        %462 = vmatprep.subr.bf16.mxu0 0
        %463 = vmatpush1.bf16.msra.mxu0 %v453
        %464 = vmatprep.subr.bf16.mxu0 0
        %465 = vmatpush1.bf16.msra.mxu0 %v452
        %466 = vmatprep.subr.bf16.mxu0 0
        %467 = vmatpush1.bf16.msra.mxu0 %v451
        %468 = vmatprep.subr.bf16.mxu0 0
        %469 = vmatpush1.bf16.msra.mxu0 %v450
        %470 = vmatprep.subr.bf16.mxu0 0
        %471 = vmatpush1.bf16.msra.mxu0 %v449
        %472 = vmatprep.subr.bf16.mxu0 0
        %473 = vmatpush1.bf16.msra.mxu0 %v448
        %474 = vmatprep.subr.bf16.mxu0 0
        %475 = vmatpush1.bf16.msra.mxu0 %v447
        %476 = vmatprep.subr.bf16.mxu0 0
        %477 = vmatpush1.bf16.msra.mxu0 %v446
        %478 = vmatprep.subr.bf16.mxu0 0
        %479 = vmatpush2.bf16.msra.mxu0 0
        %480 = vmatprep.subr.bf16.mxu0 0
        %481 = vmatpush2.bf16.msra.mxu0 0
        %482 = vmatprep.subr.bf16.mxu0 0
        %483 = vmatpush2.bf16.msra.mxu0 0
        %484 = vmatprep.subr.bf16.mxu0 0
        %485 = vmatpush2.bf16.msra.mxu0 0
        %486 = vmatprep.subr.bf16.mxu0 0
        %487 = vmatpush2.bf16.msra.mxu0 0
        %488 = vmatprep.subr.bf16.mxu0 0
        %489 = vmatpush2.bf16.msra.mxu0 0
        %490 = vmatprep.subr.bf16.mxu0 0
        %491 = vmatpush2.bf16.msra.mxu0 0
        %492 = vmatprep.subr.bf16.mxu0 0
        %493 = vmatpush2.bf16.msra.mxu0 0
        %494 = vmatprep.mubr.bf16.mxu0 0
        %495 = vmatmul.mubr.bf16.gmra.mxu0 %v390
        %v496 = vpop.f32.mrf.mxu0
        %v497 = vadd.f32 %v412, %v496
        %v498 = vpop.f32.mrf.mxu0
        %v499 = vpop.f32.mrf.mxu0
        %v500 = vadd.f32 %v412, %v499
        %v501 = vpop.f32.mrf.mxu0
        %502 = vdwg.mxu0
        %s503 = sld [smem:[#allocation2]]
        %v504 = vstv %s503
        %v505 = vmul.f32 %v497, %v504
        %v506 = vmul.f32 %v500, %v504
        %507 = vmax.xlane.f32.xlu0 %v505
        %v508 = vpop.xlane.xlu0 %507
        %509 = vmax.xlane.f32.xlu0 %v506
        %v510 = vpop.xlane.xlu0 %509
        %v511 = vsub.f32 %v505, %v508
        %v512 = vsub.f32 %v506, %v510
        %v513 = vmul.f32 %v511, 1.442695
        %v514 = vpow.pop %v513
        %v515 = vmul.f32 %v512, 1.442695
        %v516 = vpow.pop %v515
        %517 = vadd.xlane.f32.xlu0 %v514
        %v518 = vpop.xlane.xlu0 %517
        %519 = vadd.xlane.f32.xlu0 %v516
        %v520 = vpop.xlane.xlu0 %519
        %v521 = vlog2.pop %v518
        %v522 = vmul.f32 %v521, 0.6931472
        %v523 = vlog2.pop %v520
        %v524 = vmul.f32 %v523, 0.6931472
        %v525 = vsub.f32 %v511, %v522
        %v526 = vsub.f32 %v512, %v524
        %527 = vst [vmem:[%s305] sm:$0xff] %v525
        %528 = vst [vmem:[%s305 + $0x8] sm:$0xff] %v526
        %s529 = sand.u32 %s164, 1
        %s530 = scalar_lea.sflag [#allocation5], %s529
        %s531 = sand.u32 %s164, 1
        %s532 = smul.addr %s531, 16
        %s533 = scalar_lea.vmem [#allocation9], %s532
        // Predicated region
        $region57: #{tpu_custom_call.1} parent=43 // pred_check
          %p534 = pneg %p174
        $region58: #{tpu_custom_call.1} parent=43 // pred_check_branch
          %536 = sbr.rel (%p534) target = $region60
        $region59: #{tpu_custom_call.1} parent=43 // pred_region
          %s537 = smul.u32 2, %s25
          %s538 = ssub.s32 3, %s537
          %p539 = scmp.lt.s32.totalorder %s538, 2
          %s540 = scalar_select %p539, %s538, 2
          %s541 = smul.u32 128, %s540
          %s543 = ssub.s32 256, %s541
          %544 = vsyncadd %s530, %s543
          %p545 = scmp.ne.s32.totalorder 0, %s541
          %s546 = smul.addr %s537, 128
          %s547 = scalar_lea.hbm %s6, %s546
          %s548 = smul.u32 8, %s540
          %s549 = sshll.u32 %s533, 4
          %s550 = int_to_ptr.vmem [resolvable:$true] %s549
          %s551 = sshll.u32 %s548, 4
          %555 = dma.vmem_to_hbm [thread:$0]  (%p545), %s550, %s551, %s547, %s530, 128, 128, 8
        $region60: #{tpu_custom_call.1} parent=43 // pred_fallthru
          _
      $region44: #{tpu_custom_call.1} parent=5 // pred_fallthru
        _
      %p556 = scmp.le.s32.totalorder 2, %s20
      // Predicated region
      $region61: #{tpu_custom_call.1} parent=5 // pred_check
        %p557 = pneg %p556
      $region62: #{tpu_custom_call.1} parent=5 // pred_check_branch
        %559 = sbr.rel (%p557) target = $region64
      $region63: #{tpu_custom_call.1} parent=5 // pred_region
        %s560 = ssub.s32 %s20, 2
        // Predicated region
        $region65: #{tpu_custom_call.1} parent=63 // pred_check
          %p561 = pneg %p180
        $region66: #{tpu_custom_call.1} parent=63 // pred_check_branch
          %563 = sbr.rel (%p561) target = $region68
        $region67: #{tpu_custom_call.1} parent=63 // pred_region
          %s564 = sand.u32 %s165, 1
          %s565 = scalar_lea.sflag [#allocation5], %s564
          %s566 = sand.u32 %s165, 1
          %s567 = smul.addr %s566, 16
          %s568 = scalar_lea.vmem [#allocation9], %s567
          %569 = dma.done %s565, 256
        $region68: #{tpu_custom_call.1} parent=63 // pred_fallthru
          _
      $region64: #{tpu_custom_call.1} parent=5 // pred_fallthru
        _
    $region6: #{tpu_custom_call.1} parent=1 // loop_footer
      %s24 = sadd.s32 1, %s20
    $region7: #{tpu_custom_call.1} parent=1 // loop_footer_branch
      %19 = sbr.rel target = $region3
    $region8: #{tpu_custom_call.1} parent=1 // loop_exit
      _
    %570 = vsyncpa [#allocation4], 1
    %s571 = scalar_lea.sflag [#allocation4], 1
    %572 = vsyncpa %s571, 1
    %573 = vsyncpa [#allocation7], 1
    %574 = vsyncpa [#allocation5], 1
    %s575 = scalar_lea.sflag [#allocation5], 1
    %576 = vsyncpa %s575, 1

// kernel: tpu_custom_call.1
$region0: #{tpu_custom_call.1}
  #allocation0 [shape = 'u32[]', space=smem, size = 0x4, offset = 0x4, fixed_abs, tag = 'smem constant byte address 0x4 - core index']
  #allocation1 [shape = 'u32[144,128]{1,0:T(1,128)}', space=vmem, size = 0x12000, scoped, tag = 'internal scratch']
  #allocation2 [shape = 'f32[1,1]{1,0:T(1,128)S(6)}', space=smem, size = 0x200, scoped, tag = 'scoped memory for tpu_custom_call.1']
  %s0 = inlined_call_operand.<no memory space> [shape: f32[1,1], index: 0, kind: input, shape index: {}]
  %s1 = inlined_call_operand.hbm [shape: f32[20,32], index: 1, kind: input, shape index: {}]
  %s2 = inlined_call_operand.hbm [shape: bf16[32,128], index: 2, kind: input, shape index: {}]
  %s3 = inlined_call_operand.vmem [shape: f32[1,128], index: 3, kind: input, shape index: {}]
  %s4 = inlined_call_operand.hbm [shape: bf16[128,128], index: 4, kind: input, shape index: {}]
  %s5 = inlined_call_operand.vmem [shape: f32[1,128], index: 5, kind: input, shape index: {}]
  %s6 = inlined_call_operand.hbm [shape: f32[20,128], index: 6, kind: output, shape index: {}]
  %s7 = sld [smem:[#allocation0]]
  $region69: #{tpu_custom_call.1} parent=0
    _
  %s9 = ssub.s32 1, %s7
  %s10 = scalar_select 0, %s9, %s7
  %11 = sst [smem:[#allocation2]] %s0
  $region1: #{tpu_custom_call.1} parent=0
    #allocation3 [shape = 'u8[16384]{0}', space=vmem, size = 0x4000, scoped, tag = 'input window, operand 1']
    #allocation4 [shape = 's32[2]{0}', space=sflag, size = 0x8, scoped, tag = 'scoped memory for tpu_custom_call.1']
    #allocation5 [shape = 's32[2]{0}', space=sflag, size = 0x8, scoped, tag = 'scoped memory for tpu_custom_call.1']
    #allocation6 [shape = 'u8[8192]{0}', space=vmem, size = 0x2000, scoped, tag = 'input window, operand 2, single buffered']
    #allocation7 [shape = 's32[1]{0}', space=sflag, size = 0x4, scoped, tag = 'scoped memory for tpu_custom_call.1']
    #allocation8 [shape = 'u8[32768]{0}', space=vmem, size = 0x8000, scoped, tag = 'input window, operand 4, single buffered']
    #allocation9 [shape = 'u8[16384]{0}', space=vmem, size = 0x4000, scoped, tag = 'output window, operand 0']
    %12 = vsyncpa [#allocation4], 0
    %s13 = scalar_lea.sflag [#allocation4], 1
    %14 = vsyncpa %s13, 0
    %15 = vsyncpa [#allocation7], 0
    %16 = vsyncpa [#allocation5], 0
    %s17 = scalar_lea.sflag [#allocation5], 1
    %18 = vsyncpa %s17, 0
    loop: start=0, step=1, limit=4
    $region2: #{tpu_custom_call.1} parent=1 // loop_pre_header
      _
    $region3: #{tpu_custom_call.1} parent=1 // loop_header
      %s20 = sphi 0, %s24
      %p21 = scmp.ge.s32.totalorder %s20, 4
      %s28 = sphi 0, %s28
      %s30 = sphi 0, %s28
      %s31 = sphi 0, %s30
      %s45 = sphi 0, %s31
      %s51 = sphi 0, %s53
      %s54 = sphi 0, %s51
      %s55 = sphi 0, %s54
      %s71 = sphi 0, %s55
      %s75 = sphi 0, %s75
      %s77 = sphi 0, %s75
      %s78 = sphi 0, %s77
      %s92 = sphi 0, %s78
      %s96 = sphi 0, %s96
      %s98 = sphi 0, %s96
      %s99 = sphi 0, %s98
      %s113 = sphi 0, %s99
      %s117 = sphi 0, %s117
      %s119 = sphi 0, %s117
      %s120 = sphi 0, %s119
      %s134 = sphi 0, %s120
      %s138 = sphi 0, %s138
      %s140 = sphi 0, %s138
      %s141 = sphi 0, %s140
      %s155 = sphi 0, %s141
      %s161 = sphi 0, %s163
      %s164 = sphi 0, %s161
      %s165 = sphi 0, %s164
      %s181 = sphi 0, %s165
    $region4: #{tpu_custom_call.1} parent=1 // loop_header_branch
      %23 = sbr.rel (%p21) target = $region8
    $region5: #{tpu_custom_call.1} parent=1 // loop_body
      %s25 = ssub.s32 %s20, 1
      %s26 = ssub.s32 %s20, 2
      %s27 = sadd.s32 %s20, 1
      %s29 = sadd.s32 %s28, 1
      %p32 = scmp.eq.s32.totalorder %s20, 1
      %p33 = scmp.ne.s32.totalorder %s28, %s30
      %p34 = scmp.eq.s32.totalorder %s20, 0
      %p35 = por %p33, %p34
      %p36 = scmp.ne.s32.totalorder %s28, %s30
      %p37 = scmp.eq.s32.totalorder %s25, 1
      %p38 = por %p36, %p37
      %p39 = scmp.ne.s32.totalorder %s30, %s31
      %p40 = scmp.eq.s32.totalorder %s25, 0
      %p41 = por %p39, %p40
      %p42 = scmp.ne.s32.totalorder %s30, %s31
      %p43 = scmp.eq.s32.totalorder %s26, 1
      %p44 = por %p42, %p43
      %p46 = scmp.ne.s32.totalorder %s31, %s45
      %p47 = scmp.eq.s32.totalorder %s26, 0
      %p48 = por %p46, %p47
      %s49 = ssub.s32 %s20, %s27
      %p50 = scmp.eq.s32.totalorder %s49, 0
      %s52 = sadd.s32 %s51, 1
      %s53 = scalar_select %p50, %s51, %s52
      %p56 = pneg %p50
      %p57 = scmp.eq.s32.totalorder %s20, 1
      %p58 = por %p56, %p57
      %p59 = scmp.ne.s32.totalorder %s51, %s54
      %p60 = scmp.eq.s32.totalorder %s20, 0
      %p61 = por %p59, %p60
      %p62 = scmp.ne.s32.totalorder %s51, %s54
      %p63 = scmp.eq.s32.totalorder %s25, 1
      %p64 = por %p62, %p63
      %p65 = scmp.ne.s32.totalorder %s54, %s55
      %p66 = scmp.eq.s32.totalorder %s25, 0
      %p67 = por %p65, %p66
      %p68 = scmp.ne.s32.totalorder %s54, %s55
      %p69 = scmp.eq.s32.totalorder %s26, 1
      %p70 = por %p68, %p69
      %p72 = scmp.ne.s32.totalorder %s55, %s71
      %p73 = scmp.eq.s32.totalorder %s26, 0
      %p74 = por %p72, %p73
      %s76 = sadd.s32 %s75, 1
      %p79 = scmp.eq.s32.totalorder %s20, 1
      %p80 = scmp.ne.s32.totalorder %s75, %s77
      %p81 = scmp.eq.s32.totalorder %s20, 0
      %p82 = por %p80, %p81
      %p83 = scmp.ne.s32.totalorder %s75, %s77
      %p84 = scmp.eq.s32.totalorder %s25, 1
      %p85 = por %p83, %p84
      %p86 = scmp.ne.s32.totalorder %s77, %s78
      %p87 = scmp.eq.s32.totalorder %s25, 0
      %p88 = por %p86, %p87
      %p89 = scmp.ne.s32.totalorder %s77, %s78
      %p90 = scmp.eq.s32.totalorder %s26, 1
      %p91 = por %p89, %p90
      %p93 = scmp.ne.s32.totalorder %s78, %s92
      %p94 = scmp.eq.s32.totalorder %s26, 0
      %p95 = por %p93, %p94
      %s97 = sadd.s32 %s96, 1
      %p100 = scmp.eq.s32.totalorder %s20, 1
      %p101 = scmp.ne.s32.totalorder %s96, %s98
      %p102 = scmp.eq.s32.totalorder %s20, 0
      %p103 = por %p101, %p102
      %p104 = scmp.ne.s32.totalorder %s96, %s98
      %p105 = scmp.eq.s32.totalorder %s25, 1
      %p106 = por %p104, %p105
      %p107 = scmp.ne.s32.totalorder %s98, %s99
      %p108 = scmp.eq.s32.totalorder %s25, 0
      %p109 = por %p107, %p108
      %p110 = scmp.ne.s32.totalorder %s98, %s99
      %p111 = scmp.eq.s32.totalorder %s26, 1
      %p112 = por %p110, %p111
      %p114 = scmp.ne.s32.totalorder %s99, %s113
      %p115 = scmp.eq.s32.totalorder %s26, 0
      %p116 = por %p114, %p115
      %s118 = sadd.s32 %s117, 1
      %p121 = scmp.eq.s32.totalorder %s20, 1
      %p122 = scmp.ne.s32.totalorder %s117, %s119
      %p123 = scmp.eq.s32.totalorder %s20, 0
      %p124 = por %p122, %p123
      %p125 = scmp.ne.s32.totalorder %s117, %s119
      %p126 = scmp.eq.s32.totalorder %s25, 1
      %p127 = por %p125, %p126
      %p128 = scmp.ne.s32.totalorder %s119, %s120
      %p129 = scmp.eq.s32.totalorder %s25, 0
      %p130 = por %p128, %p129
      %p131 = scmp.ne.s32.totalorder %s119, %s120
      %p132 = scmp.eq.s32.totalorder %s26, 1
      %p133 = por %p131, %p132
      %p135 = scmp.ne.s32.totalorder %s120, %s134
      %p136 = scmp.eq.s32.totalorder %s26, 0
      %p137 = por %p135, %p136
      %s139 = sadd.s32 %s138, 1
      %p142 = scmp.eq.s32.totalorder %s20, 1
      %p143 = scmp.ne.s32.totalorder %s138, %s140
      %p144 = scmp.eq.s32.totalorder %s20, 0
      %p145 = por %p143, %p144
      %p146 = scmp.ne.s32.totalorder %s138, %s140
      %p147 = scmp.eq.s32.totalorder %s25, 1
      %p148 = por %p146, %p147
      %p149 = scmp.ne.s32.totalorder %s140, %s141
      %p150 = scmp.eq.s32.totalorder %s25, 0
      %p151 = por %p149, %p150
      %p152 = scmp.ne.s32.totalorder %s140, %s141
      %p153 = scmp.eq.s32.totalorder %s26, 1
      %p154 = por %p152, %p153
      %p156 = scmp.ne.s32.totalorder %s141, %s155
      %p157 = scmp.eq.s32.totalorder %s26, 0
      %p158 = por %p156, %p157
      %s159 = ssub.s32 %s20, %s27
      %p160 = scmp.eq.s32.totalorder %s159, 0
      %s162 = sadd.s32 %s161, 1
      %s163 = scalar_select %p160, %s161, %s162
      %p166 = pneg %p160
      %p167 = scmp.eq.s32.totalorder %s20, 1
      %p168 = por %p166, %p167
      %p169 = scmp.ne.s32.totalorder %s161, %s164
      %p170 = scmp.eq.s32.totalorder %s20, 0
      %p171 = por %p169, %p170
      %p172 = scmp.ne.s32.totalorder %s161, %s164
      %p173 = scmp.eq.s32.totalorder %s25, 1
      %p174 = por %p172, %p173
      %p175 = scmp.ne.s32.totalorder %s164, %s165
      %p176 = scmp.eq.s32.totalorder %s25, 0
      %p177 = por %p175, %p176
      %p178 = scmp.ne.s32.totalorder %s164, %s165
      %p179 = scmp.eq.s32.totalorder %s26, 1
      %p180 = por %p178, %p179
      %p182 = scmp.ne.s32.totalorder %s165, %s181
      %p183 = scmp.eq.s32.totalorder %s26, 0
      %p184 = por %p182, %p183
      %p185 = scmp.le.s32.totalorder 1, %s20
      %p186 = scmp.lt.s32.totalorder %s20, 3
      %p187 = pnand %p185, %p186
      %p188 = pneg %p187
      // Predicated region
      $region9: #{tpu_custom_call.1} parent=5 // pred_check
        _
      $region10: #{tpu_custom_call.1} parent=5 // pred_check_branch
        %190 = sbr.rel (%p187) target = $region12
      $region11: #{tpu_custom_call.1} parent=5 // pred_region
        %s191 = ssub.s32 %s20, 1
        // Predicated region
        $region13: #{tpu_custom_call.1} parent=11 // pred_check
          %p192 = pneg %p41
        $region14: #{tpu_custom_call.1} parent=11 // pred_check_branch
          %194 = sbr.rel (%p192) target = $region16
        $region15: #{tpu_custom_call.1} parent=11 // pred_region
          _
        $region16: #{tpu_custom_call.1} parent=11 // pred_fallthru
          _
        // Predicated region
        $region17: #{tpu_custom_call.1} parent=11 // pred_check
          %p195 = pneg %p88
        $region18: #{tpu_custom_call.1} parent=11 // pred_check_branch
          %197 = sbr.rel (%p195) target = $region20
        $region19: #{tpu_custom_call.1} parent=11 // pred_region
          %s199 = ssub.s32 256, 256
          %200 = vsyncadd [#allocation7], %s199
          %s201 = sshll.u32 [#allocation6], 4
          %s202 = int_to_ptr.vmem [resolvable:$true] %s201
          %207 = dma.hbm_to_vmem [thread:$0]  %s2, 256, %s202, [#allocation7], 64, 64, 4
        $region20: #{tpu_custom_call.1} parent=11 // pred_fallthru
          _
        // Predicated region
        $region21: #{tpu_custom_call.1} parent=11 // pred_check
          %p208 = pneg %p109
        $region22: #{tpu_custom_call.1} parent=11 // pred_check_branch
          %210 = sbr.rel (%p208) target = $region24
        $region23: #{tpu_custom_call.1} parent=11 // pred_region
          _
        $region24: #{tpu_custom_call.1} parent=11 // pred_fallthru
          _
        // Predicated region
        $region25: #{tpu_custom_call.1} parent=11 // pred_check
          %p211 = pneg %p130
        $region26: #{tpu_custom_call.1} parent=11 // pred_check_branch
          %213 = sbr.rel (%p211) target = $region28
        $region27: #{tpu_custom_call.1} parent=11 // pred_region
          %s215 = ssub.s32 1024, 1024
          %216 = vsyncadd [#allocation7], %s215
          %s217 = sshll.u32 [#allocation8], 4
          %s218 = int_to_ptr.vmem [resolvable:$true] %s217
          %223 = dma.hbm_to_vmem [thread:$0]  %s4, 1024, %s218, [#allocation7], 64, 64, 4
        $region28: #{tpu_custom_call.1} parent=11 // pred_fallthru
          _
        // Predicated region
        $region29: #{tpu_custom_call.1} parent=11 // pred_check
          %p224 = pneg %p151
        $region30: #{tpu_custom_call.1} parent=11 // pred_check_branch
          %226 = sbr.rel (%p224) target = $region32
        $region31: #{tpu_custom_call.1} parent=11 // pred_region
          _
        $region32: #{tpu_custom_call.1} parent=11 // pred_fallthru
          _
      $region12: #{tpu_custom_call.1} parent=5 // pred_fallthru
        _
      %p227 = scmp.lt.s32.totalorder %s20, 2
      // Predicated region
      $region33: #{tpu_custom_call.1} parent=5 // pred_check
        %p228 = pneg %p227
      $region34: #{tpu_custom_call.1} parent=5 // pred_check_branch
        %230 = sbr.rel (%p228) target = $region36
      $region35: #{tpu_custom_call.1} parent=5 // pred_region
        // Predicated region
        $region37: #{tpu_custom_call.1} parent=35 // pred_check
          %p231 = pneg %p61
        $region38: #{tpu_custom_call.1} parent=35 // pred_check_branch
          %233 = sbr.rel (%p231) target = $region40
        $region39: #{tpu_custom_call.1} parent=35 // pred_region
          %s234 = sand.u32 %s51, 1
          %s235 = scalar_lea.sflag [#allocation4], %s234
          %s236 = sand.u32 %s51, 1
          %s237 = smul.addr %s236, 16
          %s238 = scalar_lea.vmem [#allocation3], %s237
          %s239 = smul.u32 2, %s20
          %s240 = ssub.s32 3, %s239
          %p241 = scmp.lt.s32.totalorder %s240, 2
          %s242 = scalar_select %p241, %s240, 2
          %s243 = smul.u32 128, %s242
          %s245 = ssub.s32 256, %s243
          %246 = vsyncadd %s235, %s245
          %p247 = scmp.ne.s32.totalorder 0, %s243
          %s248 = smul.addr %s239, 128
          %s249 = scalar_lea.hbm %s1, %s248
          %s250 = smul.u32 8, %s242
          %s251 = sshll.u32 %s238, 4
          %s252 = int_to_ptr.vmem [resolvable:$true] %s251
          %s253 = sshll.u32 %s250, 4
          %257 = dma.hbm_to_vmem [thread:$0]  (%p247), %s249, %s253, %s252, %s235, 128, 128, 8
        $region40: #{tpu_custom_call.1} parent=35 // pred_fallthru
          _
      $region36: #{tpu_custom_call.1} parent=5 // pred_fallthru
        _
      %p258 = scmp.le.s32.totalorder 1, %s20
      %p259 = scmp.lt.s32.totalorder %s20, 3
      %p260 = pnand %p258, %p259
      %p261 = pneg %p260
      // Predicated region
      $region41: #{tpu_custom_call.1} parent=5 // pred_check
        _
      $region42: #{tpu_custom_call.1} parent=5 // pred_check_branch
        %263 = sbr.rel (%p260) target = $region44
      $region43: #{tpu_custom_call.1} parent=5 // pred_region
        %s264 = ssub.s32 %s20, 1
        %s265 = sand.u32 %s54, 1
        %s266 = scalar_lea.sflag [#allocation4], %s265
        %s267 = sand.u32 %s54, 1
        %s268 = smul.addr %s267, 16
        %s269 = scalar_lea.vmem [#allocation3], %s268
        // Predicated region
        $region45: #{tpu_custom_call.1} parent=43 // pred_check
          %p270 = pneg %p67
        $region46: #{tpu_custom_call.1} parent=43 // pred_check_branch
          %272 = sbr.rel (%p270) target = $region48
        $region47: #{tpu_custom_call.1} parent=43 // pred_region
          %273 = dma.done %s266, 256
        $region48: #{tpu_custom_call.1} parent=43 // pred_fallthru
          _
        // Predicated region
        $region49: #{tpu_custom_call.1} parent=43 // pred_check
          %p274 = pneg %p88
        $region50: #{tpu_custom_call.1} parent=43 // pred_check_branch
          %276 = sbr.rel (%p274) target = $region52
        $region51: #{tpu_custom_call.1} parent=43 // pred_region
          %277 = dma.done [#allocation7], 256
        $region52: #{tpu_custom_call.1} parent=43 // pred_fallthru
          _
        // Predicated region
        $region53: #{tpu_custom_call.1} parent=43 // pred_check
          %p278 = pneg %p130
        $region54: #{tpu_custom_call.1} parent=43 // pred_check_branch
          %280 = sbr.rel (%p278) target = $region56
        $region55: #{tpu_custom_call.1} parent=43 // pred_region
          %281 = dma.done [#allocation7], 1024
        $region56: #{tpu_custom_call.1} parent=43 // pred_fallthru
          _
        %p282 = pneg %p41
        %p283 = pneg %p38
        %s284 = sand.u32 %s54, 1
        %s285 = scalar_lea.sflag [#allocation4], %s284
        %s286 = sand.u32 %s54, 1
        %s287 = smul.addr %s286, 16
        %s288 = scalar_lea.vmem [#allocation3], %s287
        %p289 = pneg %p67
        %p290 = pneg %p64
        %p291 = pneg %p88
        %p292 = pneg %p85
        %p293 = pneg %p109
        %p294 = pneg %p106
        %p295 = pneg %p130
        %p296 = pneg %p127
        %p297 = pneg %p151
        %p298 = pneg %p148
        %p299 = pneg %p177
        %p300 = pneg %p174
        %s301 = sand.u32 %s164, 1
        %s302 = scalar_lea.sflag [#allocation5], %s301
        %s303 = sand.u32 %s164, 1
        %s304 = smul.addr %s303, 16
        %s305 = scalar_lea.vmem [#allocation9], %s304
        %s306 = smul.u32 2, %s25
        %s307 = ssub.s32 3, %s306
        %p308 = scmp.lt.s32.totalorder %s307, 2
        %s309 = scalar_select %p308, %s307, 2
        %s310 = smul.u32 128, %s309
        %s311 = smul.u32 2, %s25
        %s312 = ssub.s32 3, %s311
        %p313 = scmp.lt.s32.totalorder %s312, 2
        %s314 = scalar_select %p313, %s312, 2
        %s315 = smul.u32 128, %s314
        %v317 = vld [vmem:[%s269] sm:$0xff]
        %v318 = vld [vmem:[%s269 + $0x8] sm:$0xff]
        %v319 = vpack.c.bf16 %v318, %v317
        %v320 = vld [vmem:[#allocation6] sm:$0xf]
        %v321 = vld [vmem:[#allocation6 + $0x4] sm:$0xf]
        %v322 = vld [vmem:[#allocation6 + $0x8] sm:$0xf]
        %v323 = vld [vmem:[#allocation6 + $0xc] sm:$0xf]
        %v324 = vld [vmem:[%s3] sm:$0x1]
        %v326 = vlaneseq
        %v327 = vshrl.u32 %v326, 7
        %v328 = vsub.s32 0, %v327
        %v329 = vrot.slane %v324, %v328
        %v335 = vunpack.c.l.b16 %v320
        %v336 = vunpack.c.l.b16 %v321
        %v337 = vunpack.c.l.b16 %v322
        %v338 = vunpack.c.l.b16 %v323
        %v339 = vpack.c.b16 %v336, %v335
        %v340 = vpack.c.b16 %v338, %v337
        %vm343 = vcmask 261120
        %v345 = vsel %vm343, %v319, 0
        %347 = vmatprep.subr.bf16.mxu0 0
        %348 = vmatpush1.bf16.msra.mxu0 0
        %349 = vmatprep.subr.bf16.mxu0 0
        %350 = vmatpush1.bf16.msra.mxu0 0
        %351 = vmatprep.subr.bf16.mxu0 0
        %352 = vmatpush1.bf16.msra.mxu0 0
        %353 = vmatprep.subr.bf16.mxu0 0
        %354 = vmatpush1.bf16.msra.mxu0 0
        %355 = vmatprep.subr.bf16.mxu0 0
        %356 = vmatpush1.bf16.msra.mxu0 0
        %357 = vmatprep.subr.bf16.mxu0 0
        %358 = vmatpush1.bf16.msra.mxu0 0
        %359 = vmatprep.subr.bf16.mxu0 0
        %360 = vmatpush1.bf16.msra.mxu0 %v340
        %361 = vmatprep.subr.bf16.mxu0 0
        %362 = vmatpush1.bf16.msra.mxu0 %v339
        %363 = vmatprep.subr.bf16.mxu0 0
        %364 = vmatpush2.bf16.msra.mxu0 0
        %365 = vmatprep.subr.bf16.mxu0 0
        %366 = vmatpush2.bf16.msra.mxu0 0
        %367 = vmatprep.subr.bf16.mxu0 0
        %368 = vmatpush2.bf16.msra.mxu0 0
        %369 = vmatprep.subr.bf16.mxu0 0
        %370 = vmatpush2.bf16.msra.mxu0 0
        %371 = vmatprep.subr.bf16.mxu0 0
        %372 = vmatpush2.bf16.msra.mxu0 0
        %373 = vmatprep.subr.bf16.mxu0 0
        %374 = vmatpush2.bf16.msra.mxu0 0
        %375 = vmatprep.subr.bf16.mxu0 0
        %376 = vmatpush2.bf16.msra.mxu0 0
        %377 = vmatprep.subr.bf16.mxu0 0
        %378 = vmatpush2.bf16.msra.mxu0 0
        %379 = vmatprep.mubr.bf16.mxu0 0
        %380 = vmatmul.mubr.bf16.gmra.mxu0 %v345
        %v381 = vpop.f32.mrf.mxu0
        %v382 = vadd.f32 %v329, %v381
        %v383 = vpop.f32.mrf.mxu0
        %v384 = vpop.f32.mrf.mxu0
        %v385 = vadd.f32 %v329, %v384
        %v386 = vpop.f32.mrf.mxu0
        %387 = vdwg.mxu0
        %v388 = vmax.f32 %v382, 0.0
        %v389 = vmax.f32 %v385, 0.0
        %v390 = vpack.c.bf16 %v389, %v388
        %v391 = vld [vmem:[#allocation8] sm:$0xf]
        %v392 = vld [vmem:[#allocation8 + $0x4] sm:$0xf]
        %v393 = vld [vmem:[#allocation8 + $0x8] sm:$0xf]
        %v394 = vld [vmem:[#allocation8 + $0xc] sm:$0xf]
        %v395 = vld [vmem:[#allocation8 + $0x10] sm:$0xf]
        %v396 = vld [vmem:[#allocation8 + $0x14] sm:$0xf]
        %v397 = vld [vmem:[#allocation8 + $0x18] sm:$0xf]
        %v398 = vld [vmem:[#allocation8 + $0x1c] sm:$0xf]
        %v399 = vld [vmem:[#allocation8 + $0x20] sm:$0xf]
        %v400 = vld [vmem:[#allocation8 + $0x24] sm:$0xf]
        %v401 = vld [vmem:[#allocation8 + $0x28] sm:$0xf]
        %v402 = vld [vmem:[#allocation8 + $0x2c] sm:$0xf]
        %v403 = vld [vmem:[#allocation8 + $0x30] sm:$0xf]
        %v404 = vld [vmem:[#allocation8 + $0x34] sm:$0xf]
        %v405 = vld [vmem:[#allocation8 + $0x38] sm:$0xf]
        %v406 = vld [vmem:[#allocation8 + $0x3c] sm:$0xf]
        %v407 = vld [vmem:[%s5] sm:$0x1]
        %v409 = vlaneseq
        %v410 = vshrl.u32 %v409, 7
        %v411 = vsub.s32 0, %v410
        %v412 = vrot.slane %v407, %v411
        %v430 = vunpack.c.l.b16 %v391
        %v431 = vunpack.c.l.b16 %v392
        %v432 = vunpack.c.l.b16 %v393
        %v433 = vunpack.c.l.b16 %v394
        %v434 = vunpack.c.l.b16 %v395
        %v435 = vunpack.c.l.b16 %v396
        %v436 = vunpack.c.l.b16 %v397
        %v437 = vunpack.c.l.b16 %v398
        %v438 = vunpack.c.l.b16 %v399
        %v439 = vunpack.c.l.b16 %v400
        %v440 = vunpack.c.l.b16 %v401
        %v441 = vunpack.c.l.b16 %v402
        %v442 = vunpack.c.l.b16 %v403
        %v443 = vunpack.c.l.b16 %v404
        %v444 = vunpack.c.l.b16 %v405
        %v445 = vunpack.c.l.b16 %v406
        %v446 = vpack.c.b16 %v431, %v430
        %v447 = vpack.c.b16 %v433, %v432
        %v448 = vpack.c.b16 %v435, %v434
        %v449 = vpack.c.b16 %v437, %v436
        %v450 = vpack.c.b16 %v439, %v438
        %v451 = vpack.c.b16 %v441, %v440
        %v452 = vpack.c.b16 %v443, %v442
        %v453 = vpack.c.b16 %v445, %v444
        %462 = vmatprep.subr.bf16.mxu0 0
        %463 = vmatpush1.bf16.msra.mxu0 %v453
        %464 = vmatprep.subr.bf16.mxu0 0
        %465 = vmatpush1.bf16.msra.mxu0 %v452
        %466 = vmatprep.subr.bf16.mxu0 0
        %467 = vmatpush1.bf16.msra.mxu0 %v451
        %468 = vmatprep.subr.bf16.mxu0 0
        %469 = vmatpush1.bf16.msra.mxu0 %v450
        %470 = vmatprep.subr.bf16.mxu0 0
        %471 = vmatpush1.bf16.msra.mxu0 %v449
        %472 = vmatprep.subr.bf16.mxu0 0
        %473 = vmatpush1.bf16.msra.mxu0 %v448
        %474 = vmatprep.subr.bf16.mxu0 0
        %475 = vmatpush1.bf16.msra.mxu0 %v447
        %476 = vmatprep.subr.bf16.mxu0 0
        %477 = vmatpush1.bf16.msra.mxu0 %v446
        %478 = vmatprep.subr.bf16.mxu0 0
        %479 = vmatpush2.bf16.msra.mxu0 0
        %480 = vmatprep.subr.bf16.mxu0 0
        %481 = vmatpush2.bf16.msra.mxu0 0
        %482 = vmatprep.subr.bf16.mxu0 0
        %483 = vmatpush2.bf16.msra.mxu0 0
        %484 = vmatprep.subr.bf16.mxu0 0
        %485 = vmatpush2.bf16.msra.mxu0 0
        %486 = vmatprep.subr.bf16.mxu0 0
        %487 = vmatpush2.bf16.msra.mxu0 0
        %488 = vmatprep.subr.bf16.mxu0 0
        %489 = vmatpush2.bf16.msra.mxu0 0
        %490 = vmatprep.subr.bf16.mxu0 0
        %491 = vmatpush2.bf16.msra.mxu0 0
        %492 = vmatprep.subr.bf16.mxu0 0
        %493 = vmatpush2.bf16.msra.mxu0 0
        %494 = vmatprep.mubr.bf16.mxu0 0
        %495 = vmatmul.mubr.bf16.gmra.mxu0 %v390
        %v496 = vpop.f32.mrf.mxu0
        %v497 = vadd.f32 %v412, %v496
        %v498 = vpop.f32.mrf.mxu0
        %v499 = vpop.f32.mrf.mxu0
        %v500 = vadd.f32 %v412, %v499
        %v501 = vpop.f32.mrf.mxu0
        %502 = vdwg.mxu0
        %s503 = sld [smem:[#allocation2]]
        %v504 = vstv %s503
        %v505 = vmul.f32 %v497, %v504
        %v506 = vmul.f32 %v500, %v504
        %507 = vmax.xlane.f32.xlu0 %v505
        %v508 = vpop.xlane.xlu0 %507
        %509 = vmax.xlane.f32.xlu0 %v506
        %v510 = vpop.xlane.xlu0 %509
        %v511 = vsub.f32 %v505, %v508
        %v512 = vsub.f32 %v506, %v510
        %v513 = vmul.f32 %v511, 1.442695
        %v514 = vpow.pop %v513
        %v515 = vmul.f32 %v512, 1.442695
        %v516 = vpow.pop %v515
        %517 = vadd.xlane.f32.xlu0 %v514
        %v518 = vpop.xlane.xlu0 %517
        %519 = vadd.xlane.f32.xlu0 %v516
        %v520 = vpop.xlane.xlu0 %519
        %v521 = vlog2.pop %v518
        %v522 = vmul.f32 %v521, 0.6931472
        %v523 = vlog2.pop %v520
        %v524 = vmul.f32 %v523, 0.6931472
        %v525 = vsub.f32 %v511, %v522
        %v526 = vsub.f32 %v512, %v524
        %527 = vst [vmem:[%s305] sm:$0xff] %v525
        %528 = vst [vmem:[%s305 + $0x8] sm:$0xff] %v526
        %s529 = sand.u32 %s164, 1
        %s530 = scalar_lea.sflag [#allocation5], %s529
        %s531 = sand.u32 %s164, 1
        %s532 = smul.addr %s531, 16
        %s533 = scalar_lea.vmem [#allocation9], %s532
        // Predicated region
        $region57: #{tpu_custom_call.1} parent=43 // pred_check
          %p534 = pneg %p174
        $region58: #{tpu_custom_call.1} parent=43 // pred_check_branch
          %536 = sbr.rel (%p534) target = $region60
        $region59: #{tpu_custom_call.1} parent=43 // pred_region
          %s537 = smul.u32 2, %s25
          %s538 = ssub.s32 3, %s537
          %p539 = scmp.lt.s32.totalorder %s538, 2
          %s540 = scalar_select %p539, %s538, 2
          %s541 = smul.u32 128, %s540
          %s543 = ssub.s32 256, %s541
          %544 = vsyncadd %s530, %s543
          %p545 = scmp.ne.s32.totalorder 0, %s541
          %s546 = smul.addr %s537, 128
          %s547 = scalar_lea.hbm %s6, %s546
          %s548 = smul.u32 8, %s540
          %s549 = sshll.u32 %s533, 4
          %s550 = int_to_ptr.vmem [resolvable:$true] %s549
          %s551 = sshll.u32 %s548, 4
          %555 = dma.vmem_to_hbm [thread:$0]  (%p545), %s550, %s551, %s547, %s530, 128, 128, 8
        $region60: #{tpu_custom_call.1} parent=43 // pred_fallthru
          _
      $region44: #{tpu_custom_call.1} parent=5 // pred_fallthru
        _
      %p556 = scmp.le.s32.totalorder 2, %s20
      // Predicated region
      $region61: #{tpu_custom_call.1} parent=5 // pred_check
        %p557 = pneg %p556
      $region62: #{tpu_custom_call.1} parent=5 // pred_check_branch
        %559 = sbr.rel (%p557) target = $region64
      $region63: #{tpu_custom_call.1} parent=5 // pred_region
        %s560 = ssub.s32 %s20, 2
        // Predicated region
        $region65: #{tpu_custom_call.1} parent=63 // pred_check
          %p561 = pneg %p180
        $region66: #{tpu_custom_call.1} parent=63 // pred_check_branch
          %563 = sbr.rel (%p561) target = $region68
        $region67: #{tpu_custom_call.1} parent=63 // pred_region
          %s564 = sand.u32 %s165, 1
          %s565 = scalar_lea.sflag [#allocation5], %s564
          %s566 = sand.u32 %s165, 1
          %s567 = smul.addr %s566, 16
          %s568 = scalar_lea.vmem [#allocation9], %s567
          %569 = dma.done %s565, 256
        $region68: #{tpu_custom_call.1} parent=63 // pred_fallthru
          _
      $region64: #{tpu_custom_call.1} parent=5 // pred_fallthru
        _
    $region6: #{tpu_custom_call.1} parent=1 // loop_footer
      %s24 = sadd.s32 1, %s20
    $region7: #{tpu_custom_call.1} parent=1 // loop_footer_branch
      %19 = sbr.rel target = $region3
    $region8: #{tpu_custom_call.1} parent=1 // loop_exit
      _
    %570 = vsyncpa [#allocation4], 1
    %s571 = scalar_lea.sflag [#allocation4], 1
    %572 = vsyncpa %s571, 1
    %573 = vsyncpa [#allocation7], 1
    %574 = vsyncpa [#allocation5], 1
    %s575 = scalar_lea.sflag [#allocation5], 1
    %576 = vsyncpa %s575, 1

</llo_original>
